<compile_context>
chip_gen: v6e
topology: v6e:2x2x1
jax: 0.10.0
libtpu: 0.0.40
codegen_flags: <defaults>
</compile_context>

<pallas_src>
import functools
import math

import jax
import jax.numpy as jnp
from jax.experimental import pallas as pl
from jax.experimental.pallas import tpu as pltpu

_LANE = 128
_TM_CAP = 1024  # rows; measured ~86% of HBM roofline at 1024-row tiles on v6e

# Flipped to False (once) if this jax build rejects pipeline_mode / Buffered.
_PIPELINE_MODE_OK = hasattr(pl, "Buffered")


def _round_up(x, m):
    return ((x + m - 1) // m) * m


def _cdiv(a, b):
    return (a + b - 1) // b


def _per_core_vmem_bytes():
    """Per-TensorCore VMEM capacity, conservative for budgeting."""
    try:
        cap = int(pltpu.get_tpu_info().vmem_capacity_bytes)
    except Exception:
        cap = None
    kind = ""
    try:
        kind = jax.devices()[0].device_kind.lower()
    except Exception:
        kind = ""
    if cap is None or cap <= 0:
        cap = 64 << 20  # conservative lower bound (v7x per-TC VMEM)
    # v7x has 64 MiB per TensorCore; guard against a per-chip (2-core) report.
    if "7" in kind:
        cap = min(cap, 64 << 20)
    return cap


def _sla_kernel(x_ref, at_ref, bt_ref, o_ref, *, scale):
    # x_ref : (TM, in)        VMEM tile of x (dropout p=0 -> identity)
    # at_ref: (in, r)         VMEM, resident (sla_A.T)
    # bt_ref: (r, out_pad)    VMEM, resident (sla_B.T, lane-padded)
    # o_ref : (TM, out_pad)   VMEM tile (lane-dense store)
    xa = jnp.dot(x_ref[...], at_ref[...], preferred_element_type=jnp.float32)
    xa = xa * scale                  # (TM, r) f32 VPU multiply, hidden under DMA
    xa = xa.astype(bt_ref.dtype)     # keep second dot on B's native MXU path
    y = jnp.dot(xa, bt_ref[...], preferred_element_type=jnp.float32)
    o_ref[...] = y.astype(o_ref.dtype)


def _build_specs(tm, in_features, r, out_pad, x_bufs, out_bufs, w_bufs,
                 use_pipeline_mode):
    def spec(shape, index_map, bufs):
        if use_pipeline_mode and bufs != 2:
            return pl.BlockSpec(shape, index_map, pipeline_mode=pl.Buffered(bufs))
        return pl.BlockSpec(shape, index_map)

    in_specs = [
        spec((tm, in_features), lambda i: (i, 0), x_bufs),
        spec((in_features, r), lambda i: (0, 0), w_bufs),   # resident weight
        spec((r, out_pad), lambda i: (0, 0), w_bufs),        # resident weight
    ]
    out_specs = spec((tm, out_pad), lambda i: (i, 0), out_bufs)
    return in_specs, out_specs


def sla_linear(x, sla_A, sla_B, sla_alpha):
    """Pallas implementation of SLALinear.forward (sla_dropout = 0).

    x     : (..., in_features)
    sla_A : (r, in_features)
    sla_B : (out_features, r)
    returns (..., out_features)
    """
    global _PIPELINE_MODE_OK

    r, in_features = sla_A.shape
    out_features, rb = sla_B.shape
    assert rb == r, "sla_A / sla_B rank mismatch"
    scaling = float(sla_alpha) / float(r)

    orig_shape = x.shape
    x2d = x.reshape(-1, in_features)
    M = x2d.shape[0]
    if M == 0:  # empty-batch edge case: no grid to run
        return jnp.zeros(orig_shape[:-1] + (out_features,), dtype=x.dtype)

    a_t = sla_A.T   # (in, r); alpha/r applied in-kernel in f32
    b_t = sla_B.T   # (r, out)

    # Lane-dense output: pad out_features up to a multiple of 128 so output stores
    # are unmasked vst; the pad columns are sliced off after the call.
    out_pad = _round_up(out_features, _LANE)
    if out_pad != out_features:
        b_t = jnp.pad(b_t, ((0, 0), (0, out_pad - out_features)))

    x_isz = x2d.dtype.itemsize
    o_isz = x2d.dtype.itemsize
    w_isz = b_t.dtype.itemsize
    sublane = 8 if x_isz >= 4 else (16 if x_isz == 2 else 32)

    vmem = _per_core_vmem_bytes()
    big_vmem = vmem >= (100 << 20)          # v5e / v6e: 128 MiB per TensorCore
    x_bufs = 3 if big_vmem else 2           # deeper pipeline where VMEM is plentiful
    out_bufs = 3 if big_vmem else 2
    w_bufs = 2 if big_vmem else 1           # single-buffer resident weights on v7x

    # Per-row VMEM cost: pipelined x/out slabs + Mosaic's internal f32 accumulator
    # for the (TM, out_pad) result + the (TM, r) intermediate (and its cast copy).
    per_row = (x_bufs * in_features * x_isz
               + out_bufs * out_pad * o_isz
               + out_pad * 4
               + 2 * r * 4)
    weight_bytes = 2 * (in_features * r + r * out_pad) * w_isz  # worst-case 2-buffered
    budget = (vmem * 3) // 5 - weight_bytes                      # headroom for compiler
    tm_cap = max(sublane, min(_TM_CAP, budget // max(per_row, 1)))
    tm_cap = max(sublane, (tm_cap // sublane) * sublane)

    # Pick the tile count first (bounds padding waste), keep both v7x cores busy,
    # then rebalance the tile size to an even split rounded to the sublane tile.
    num_tiles = _cdiv(M, tm_cap)
    if num_tiles == 1 and M > 2 * sublane:
        num_tiles = 2                                   # >=2 grid steps for megacore
    elif num_tiles > 1 and num_tiles % 2 == 1 and _cdiv(M, num_tiles + 1) >= 128:
        num_tiles += 1                                  # prefer an even tile count
    tm = max(sublane, _round_up(_cdiv(M, num_tiles), sublane))
    m_pad = _round_up(M, tm)
    if m_pad != M:
        x2d = jnp.pad(x2d, ((0, m_pad - M), (0, 0)))
    grid = (m_pad // tm,)

    # VMEM limit covers the chosen buffering and the no-pipeline_mode fallback.
    needed = (max(x_bufs, 2) * tm * in_features * x_isz
              + max(out_bufs, 2) * tm * out_pad * o_isz
              + tm * out_pad * 4 + 2 * tm * r * 4
              + weight_bytes)
    vmem_limit = int(min(vmem, max(needed + (8 << 20), 32 << 20)))

    cost = pl.CostEstimate(
        flops=2 * m_pad * r * (in_features + out_pad),
        transcendentals=0,
        bytes_accessed=(m_pad * in_features * x_isz
                        + m_pad * out_pad * o_isz
                        + (in_features * r + r * out_pad) * w_isz),
    )

    kernel = functools.partial(_sla_kernel, scale=scaling)

    def _call(use_pipeline_mode):
        in_specs, out_specs = _build_specs(
            tm, in_features, r, out_pad, x_bufs, out_bufs, w_bufs, use_pipeline_mode)
        return pl.pallas_call(
            kernel,
            out_shape=jax.ShapeDtypeStruct((m_pad, out_pad), x.dtype),
            grid_spec=pltpu.PrefetchScalarGridSpec(
                num_scalar_prefetch=0,
                grid=grid,
                in_specs=in_specs,
                out_specs=out_specs,
            ),
            compiler_params=pltpu.CompilerParams(
                dimension_semantics=("parallel",),   # megacore sharding on v7x
                vmem_limit_bytes=vmem_limit,
            ),
            cost_estimate=cost,
        )(x2d, a_t, b_t)

    if _PIPELINE_MODE_OK:
        try:
            out = _call(True)
        except Exception:
            _PIPELINE_MODE_OK = False   # this jax build rejects pipeline_mode; retry plain
            out = _call(False)
    else:
        out = _call(False)

    if m_pad != M or out_pad != out_features:
        out = out[:M, :out_features]
    return out.reshape(orig_shape[:-1] + (out_features,))


def init_sla_params(key, in_features, out_features, r, dtype=jnp.float32):
    """Deterministic parameter init matching SLALinear.__init__."""
    # kaiming_uniform_(a=sqrt(5)) on a (r, in_features) tensor:
    #   gain = sqrt(2 / (1 + a^2)) = sqrt(1/3); bound = gain*sqrt(3/fan_in) = 1/sqrt(fan_in)
    bound = 1.0 / math.sqrt(in_features)
    sla_A = jax.random.uniform(
        key, (r, in_features), dtype=dtype, minval=-bound, maxval=bound
    )
    sla_B = jnp.zeros((out_features, r), dtype=dtype)  # nn.init.zeros_
    return sla_A, sla_B


if __name__ == "__main__":
    key = jax.random.PRNGKey(0)
    k_x, k_a, k_b, k_x2, k_x3 = jax.random.split(key, 5)

    batch, seq, in_features, out_features, r, sla_alpha = 2, 8, 32, 32, 8, 16
    scaling = sla_alpha / r

    x = jax.random.normal(k_x, (batch, seq, in_features), dtype=jnp.float32)
    sla_A, sla_B = init_sla_params(k_a, in_features, out_features, r)

    # Zero-init B (module default) -> output must be exactly zero.
    out = jax.block_until_ready(sla_linear(x, sla_A, sla_B, sla_alpha))
    ref = (x @ sla_A.T @ sla_B.T) * scaling
    assert out.shape == ref.shape
    assert jnp.allclose(out, ref, atol=1e-5), "mismatch vs reference (zero B)"

    # Nonzero B exercises the full low-rank path (and the lane-padded output).
    sla_B_nz = jax.random.normal(k_b, (out_features, r), dtype=jnp.float32) * 0.02
    out_nz = jax.block_until_ready(sla_linear(x, sla_A, sla_B_nz, sla_alpha))
    ref_nz = (x @ sla_A.T @ sla_B_nz.T) * scaling
    assert jnp.allclose(out_nz, ref_nz, atol=1e-4), "mismatch vs reference (nonzero B)"

    # Ragged M (not a multiple of the sublane tile) exercises padding + tile rebalance.
    x_rag = jax.random.normal(k_x2, (3, 37, in_features), dtype=jnp.float32)
    out_rag = jax.block_until_ready(sla_linear(x_rag, sla_A, sla_B_nz, sla_alpha))
    ref_rag = (x_rag @ sla_A.T @ sla_B_nz.T) * scaling
    assert jnp.allclose(out_rag, ref_rag, atol=1e-4), "mismatch vs reference (ragged M)"

    # Larger M exercises the multi-step (pipelined, parallel) grid.
    x_big = jax.random.normal(k_x3, (4, 512, in_features), dtype=jnp.float32)
    out_big = jax.block_until_ready(sla_linear(x_big, sla_A, sla_B_nz, sla_alpha))
    ref_big = (x_big @ sla_A.T @ sla_B_nz.T) * scaling
    assert jnp.allclose(out_big, ref_big, atol=1e-4), "mismatch vs reference (multi-tile)"

    print("KERNEL_OK")
</pallas_src>

<mosaic_0001>
module attributes {stable_mosaic.version = 11 : i64} {
  func.func @_sla_kernel(%arg0: i32, %arg1: memref<16x32xf32, #tpu.memory_space<vmem>>, %arg2: memref<32x8xf32, #tpu.memory_space<vmem>>, %arg3: memref<8x128xf32, #tpu.memory_space<vmem>>, %arg4: memref<16x128xf32, #tpu.memory_space<vmem>>) attributes {dimension_semantics = [#tpu.dimension_semantics<parallel>], iteration_bounds = array<i64: 1>, scalar_prefetch = 0 : i64, scratch_operands = 0 : i64, tpu.core_type = #tpu.core_type<tc>, window_params = [{transform_indices = @transform_0, window_bounds = array<i64: 16, 32>}, {pipeline_mode = #tpu.pipeline_mode<synchronous>, transform_indices = @transform_1, window_bounds = array<i64: 32, 8>}, {pipeline_mode = #tpu.pipeline_mode<synchronous>, transform_indices = @transform_2, window_bounds = array<i64: 8, 128>}, {transform_indices = @transform_3, window_bounds = array<i64: 16, 128>}]} {
    %c0 = arith.constant 0 : index
    %c0_0 = arith.constant 0 : index
    %0 = vector.load %arg1[%c0, %c0_0] : memref<16x32xf32, #tpu.memory_space<vmem>>, vector<16x32xf32>
    %c0_1 = arith.constant 0 : index
    %c0_2 = arith.constant 0 : index
    %1 = vector.load %arg2[%c0_1, %c0_2] : memref<32x8xf32, #tpu.memory_space<vmem>>, vector<32x8xf32>
    %cst = arith.constant dense<0.000000e+00> : vector<16x8xf32>
    %2 = tpu.matmul %0, %1, %cst {dimension_numbers = #tpu.dot_dimension_numbers<[1], [0], [0], [1], [0, 0, 1, 1], [], []>} : vector<16x32xf32>, vector<32x8xf32>, vector<16x8xf32> -> vector<16x8xf32>
    %cst_3 = arith.constant 2.000000e+00 : f32
    %3 = vector.broadcast %cst_3 : f32 to vector<16x8xf32>
    %4 = arith.mulf %2, %3 : vector<16x8xf32>
    %c0_4 = arith.constant 0 : index
    %c0_5 = arith.constant 0 : index
    %5 = vector.load %arg3[%c0_4, %c0_5] : memref<8x128xf32, #tpu.memory_space<vmem>>, vector<8x128xf32>
    %cst_6 = arith.constant dense<0.000000e+00> : vector<16x128xf32>
    %6 = tpu.matmul %4, %5, %cst_6 {dimension_numbers = #tpu.dot_dimension_numbers<[1], [0], [0], [1], [0, 0, 1, 1], [], []>} : vector<16x8xf32>, vector<8x128xf32>, vector<16x128xf32> -> vector<16x128xf32>
    %c0_7 = arith.constant 0 : index
    %c0_8 = arith.constant 0 : index
    %7 = vector.load %arg4[%c0_7, %c0_8] : memref<16x128xf32, #tpu.memory_space<vmem>>, vector<16x128xf32>
    tpu.vector_store %arg4[%c0_7, %c0_8], %6 {strides = array<i32>} : memref<16x128xf32, #tpu.memory_space<vmem>>, vector<16x128xf32>,
    return
  }
  func.func @transform_0(%arg0: i32) -> (i32, i32) {
    %c0_i32 = arith.constant 0 : i32
    %c0_i32_0 = arith.constant 0 : i32
    return %arg0, %c0_i32 : i32, i32
  }
  func.func @transform_1(%arg0: i32) -> (i32, i32) {
    %c0_i32 = arith.constant 0 : i32
    %c0_i32_0 = arith.constant 0 : i32
    %c0_i32_1 = arith.constant 0 : i32
    return %c0_i32, %c0_i32_0 : i32, i32
  }
  func.func @transform_2(%arg0: i32) -> (i32, i32) {
    %c0_i32 = arith.constant 0 : i32
    %c0_i32_0 = arith.constant 0 : i32
    %c0_i32_1 = arith.constant 0 : i32
    return %c0_i32, %c0_i32_0 : i32, i32
  }
  func.func @transform_3(%arg0: i32) -> (i32, i32) {
    %c0_i32 = arith.constant 0 : i32
    %c0_i32_0 = arith.constant 0 : i32
    return %arg0, %c0_i32 : i32, i32
  }
}

module attributes {stable_mosaic.version = 11 : i64} {
  func.func @_sla_kernel(%arg0: i32, %arg1: memref<16x32xf32, #tpu.memory_space<vmem>>, %arg2: memref<32x8xf32, #tpu.memory_space<vmem>>, %arg3: memref<8x128xf32, #tpu.memory_space<vmem>>, %arg4: memref<16x128xf32, #tpu.memory_space<vmem>>) attributes {dimension_semantics = [#tpu.dimension_semantics<parallel>], iteration_bounds = array<i64: 1>, scalar_prefetch = 0 : i64, scratch_operands = 0 : i64, tpu.core_type = #tpu.core_type<tc>, window_params = [{transform_indices = @transform_0, window_bounds = array<i64: 16, 32>}, {pipeline_mode = #tpu.pipeline_mode<synchronous>, transform_indices = @transform_1, window_bounds = array<i64: 32, 8>}, {pipeline_mode = #tpu.pipeline_mode<synchronous>, transform_indices = @transform_2, window_bounds = array<i64: 8, 128>}, {transform_indices = @transform_3, window_bounds = array<i64: 16, 128>}]} {
    %c0 = arith.constant 0 : index
    %c0_0 = arith.constant 0 : index
    %0 = vector.load %arg1[%c0, %c0_0] : memref<16x32xf32, #tpu.memory_space<vmem>>, vector<16x32xf32>
    %c0_1 = arith.constant 0 : index
    %c0_2 = arith.constant 0 : index
    %1 = vector.load %arg2[%c0_1, %c0_2] : memref<32x8xf32, #tpu.memory_space<vmem>>, vector<32x8xf32>
    %cst = arith.constant dense<0.000000e+00> : vector<16x8xf32>
    %2 = tpu.matmul %0, %1, %cst {dimension_numbers = #tpu.dot_dimension_numbers<[1], [0], [0], [1], [0, 0, 1, 1], [], []>} : vector<16x32xf32>, vector<32x8xf32>, vector<16x8xf32> -> vector<16x8xf32>
    %cst_3 = arith.constant 2.000000e+00 : f32
    %3 = vector.broadcast %cst_3 : f32 to vector<16x8xf32>
    %4 = arith.mulf %2, %3 : vector<16x8xf32>
    %c0_4 = arith.constant 0 : index
    %c0_5 = arith.constant 0 : index
    %5 = vector.load %arg3[%c0_4, %c0_5] : memref<8x128xf32, #tpu.memory_space<vmem>>, vector<8x128xf32>
    %cst_6 = arith.constant dense<0.000000e+00> : vector<16x128xf32>
    %6 = tpu.matmul %4, %5, %cst_6 {dimension_numbers = #tpu.dot_dimension_numbers<[1], [0], [0], [1], [0, 0, 1, 1], [], []>} : vector<16x8xf32>, vector<8x128xf32>, vector<16x128xf32> -> vector<16x128xf32>
    %c0_7 = arith.constant 0 : index
    %c0_8 = arith.constant 0 : index
    %7 = vector.load %arg4[%c0_7, %c0_8] : memref<16x128xf32, #tpu.memory_space<vmem>>, vector<16x128xf32>
    tpu.vector_store %arg4[%c0_7, %c0_8], %6 {strides = array<i32>} : memref<16x128xf32, #tpu.memory_space<vmem>>, vector<16x128xf32>,
    return
  }
  func.func @transform_0(%arg0: i32) -> (i32, i32) {
    %c0_i32 = arith.constant 0 : i32
    %c0_i32_0 = arith.constant 0 : i32
    return %arg0, %c0_i32 : i32, i32
  }
  func.func @transform_1(%arg0: i32) -> (i32, i32) {
    %c0_i32 = arith.constant 0 : i32
    %c0_i32_0 = arith.constant 0 : i32
    %c0_i32_1 = arith.constant 0 : i32
    return %c0_i32, %c0_i32_0 : i32, i32
  }
  func.func @transform_2(%arg0: i32) -> (i32, i32) {
    %c0_i32 = arith.constant 0 : i32
    %c0_i32_0 = arith.constant 0 : i32
    %c0_i32_1 = arith.constant 0 : i32
    return %c0_i32, %c0_i32_0 : i32, i32
  }
  func.func @transform_3(%arg0: i32) -> (i32, i32) {
    %c0_i32 = arith.constant 0 : i32
    %c0_i32_0 = arith.constant 0 : i32
    return %arg0, %c0_i32 : i32, i32
  }
}

</mosaic_0001>

<llo_original>
// kernel: tpu_custom_call.1
$region0: #{tpu_custom_call.1}
  #allocation0 [shape = 'u32[]', space=smem, size = 0x4, offset = 0x4, fixed_abs, tag = 'smem constant byte address 0x4 - core index']
  #allocation1 [shape = 'u32[144,128]{1,0:T(1,128)}', space=vmem, size = 0x12000, scoped, tag = 'internal scratch']
  %s0 = inlined_call_operand.vmem [shape: f32[16,32], index: 0, kind: input, shape index: {}]
  %s1 = inlined_call_operand.vmem [shape: f32[32,8], index: 1, kind: input, shape index: {}]
  %s2 = inlined_call_operand.vmem [shape: f32[8,128], index: 2, kind: input, shape index: {}]
  %s3 = inlined_call_operand.hbm [shape: f32[16,128], index: 3, kind: output, shape index: {}]
  %s4 = sld [smem:[#allocation0]]
  $region22: #{tpu_custom_call.1} parent=0
    _
  %s6 = ssub.s32 1, %s4
  %s7 = scalar_select 0, %s6, %s4
  $region1: #{tpu_custom_call.1} parent=0
    #allocation2 [shape = 'u8[8192]{0}', space=vmem, size = 0x2000, scoped, tag = 'output window, operand 0, single buffered']
    #allocation3 [shape = 's32[1]{0}', space=sflag, size = 0x4, scoped, tag = 'scoped memory for tpu_custom_call.1']
    %8 = vsyncpa [#allocation3], 0
    // Predicated region
    $region2: #{tpu_custom_call.1} parent=1 // pred_check
      _
    $region3: #{tpu_custom_call.1} parent=1 // pred_check_branch
      %10 = sbr.rel (0) target = $region5
    $region4: #{tpu_custom_call.1} parent=1 // pred_region
      _
    $region5: #{tpu_custom_call.1} parent=1 // pred_fallthru
      _
    // Predicated region
    $region6: #{tpu_custom_call.1} parent=1 // pred_check
      _
    $region7: #{tpu_custom_call.1} parent=1 // pred_check_branch
      %12 = sbr.rel (0) target = $region9
    $region8: #{tpu_custom_call.1} parent=1 // pred_region
      _
    $region9: #{tpu_custom_call.1} parent=1 // pred_fallthru
      _
    // Predicated region
    $region10: #{tpu_custom_call.1} parent=1 // pred_check
      _
    $region11: #{tpu_custom_call.1} parent=1 // pred_check_branch
      %14 = sbr.rel (0) target = $region13
    $region12: #{tpu_custom_call.1} parent=1 // pred_region
      _
    $region13: #{tpu_custom_call.1} parent=1 // pred_fallthru
      _
    %v15 = vld [vmem:[%s0] sm:$0xff]
    %v16 = vld [vmem:[%s0 + $0x8] sm:$0xff]
    %v17 = vld [vmem:[%s1] sm:$0xff]
    %v18 = vld [vmem:[%s1 + $0x8] sm:$0xff]
    %v19 = vld [vmem:[%s1 + $0x10] sm:$0xff]
    %v20 = vld [vmem:[%s1 + $0x18] sm:$0xff]
    %vm21 = vcmask 261120
    %v23 = vsel %vm21, %v15, 0
    %v26 = vsel %vm21, %v16, 0
    %28 = vmatprep.subr.mxu0 0.0
    %29 = vmatpush1.msra.mxu0 0.0
    %30 = vmatprep.subr.mxu0 0.0
    %31 = vmatpush1.msra.mxu0 0.0
    %32 = vmatprep.subr.mxu0 0.0
    %33 = vmatpush1.msra.mxu0 0.0
    %34 = vmatprep.subr.mxu0 0.0
    %35 = vmatpush1.msra.mxu0 0.0
    %36 = vmatprep.subr.mxu0 0.0
    %37 = vmatpush1.msra.mxu0 0.0
    %38 = vmatprep.subr.mxu0 0.0
    %39 = vmatpush1.msra.mxu0 0.0
    %40 = vmatprep.subr.mxu0 0.0
    %41 = vmatpush1.msra.mxu0 0.0
    %42 = vmatprep.subr.mxu0 0.0
    %43 = vmatpush1.msra.mxu0 0.0
    %44 = vmatprep.subr.mxu0 0.0
    %45 = vmatpush1.msra.mxu0 0.0
    %46 = vmatprep.subr.mxu0 0.0
    %47 = vmatpush1.msra.mxu0 0.0
    %48 = vmatprep.subr.mxu0 0.0
    %49 = vmatpush1.msra.mxu0 0.0
    %50 = vmatprep.subr.mxu0 0.0
    %51 = vmatpush1.msra.mxu0 0.0
    %52 = vmatprep.subr.mxu0 0.0
    %53 = vmatpush1.msra.mxu0 %v20
    %54 = vmatprep.subr.mxu0 0.0
    %55 = vmatpush1.msra.mxu0 %v19
    %56 = vmatprep.subr.mxu0 0.0
    %57 = vmatpush1.msra.mxu0 %v18
    %58 = vmatprep.subr.mxu0 0.0
    %59 = vmatpush1.msra.mxu0 %v17
    %60 = vmatprep.subr.mxu0 0.0
    %61 = vmatpush2.msra.mxu0 0.0
    %62 = vmatprep.subr.mxu0 0.0
    %63 = vmatpush2.msra.mxu0 0.0
    %64 = vmatprep.subr.mxu0 0.0
    %65 = vmatpush2.msra.mxu0 0.0
    %66 = vmatprep.subr.mxu0 0.0
    %67 = vmatpush2.msra.mxu0 0.0
    %68 = vmatprep.subr.mxu0 0.0
    %69 = vmatpush2.msra.mxu0 0.0
    %70 = vmatprep.subr.mxu0 0.0
    %71 = vmatpush2.msra.mxu0 0.0
    %72 = vmatprep.subr.mxu0 0.0
    %73 = vmatpush2.msra.mxu0 0.0
    %74 = vmatprep.subr.mxu0 0.0
    %75 = vmatpush2.msra.mxu0 0.0
    %76 = vmatprep.subr.mxu0 0.0
    %77 = vmatpush2.msra.mxu0 0.0
    %78 = vmatprep.subr.mxu0 0.0
    %79 = vmatpush2.msra.mxu0 0.0
    %80 = vmatprep.subr.mxu0 0.0
    %81 = vmatpush2.msra.mxu0 0.0
    %82 = vmatprep.subr.mxu0 0.0
    %83 = vmatpush2.msra.mxu0 0.0
    %84 = vmatprep.subr.mxu0 0.0
    %85 = vmatpush2.msra.mxu0 0.0
    %86 = vmatprep.subr.mxu0 0.0
    %87 = vmatpush2.msra.mxu0 0.0
    %88 = vmatprep.subr.mxu0 0.0
    %89 = vmatpush2.msra.mxu0 0.0
    %90 = vmatprep.subr.mxu0 0.0
    %91 = vmatpush2.msra.mxu0 0.0
    %92 = vmatprep.mubr.f32.mxu0 0.0
    %93 = vmatmul.mubr.f32.gmra.mxu0 %v23
    %v94 = vpop.f32.mrf.mxu0
    %v95 = vadd.f32 0.0, %v94
    %v96 = vpop.f32.mrf.mxu0
    %97 = vmatprep.mubr.f32.mxu0 0.0
    %98 = vmatmul.mubr.f32.gmra.mxu0 %v26
    %v99 = vpop.f32.mrf.mxu0
    %v100 = vadd.f32 0.0, %v99
    %v101 = vpop.f32.mrf.mxu0
    %102 = vdwg.mxu0
    %v103 = vmul.f32 %v95, 2.0
    %v104 = vmul.f32 %v100, 2.0
    %v105 = vld [vmem:[%s2] sm:$0xff]
    %vm106 = vcmask 64512
    %v108 = vsel %vm106, %v103, 0
    %v111 = vsel %vm106, %v104, 0
    %113 = vmatprep.subr.mxu0 0.0
    %114 = vmatpush1.msra.mxu0 0.0
    %115 = vmatprep.subr.mxu0 0.0
    %116 = vmatpush1.msra.mxu0 0.0
    %117 = vmatprep.subr.mxu0 0.0
    %118 = vmatpush1.msra.mxu0 0.0
    %119 = vmatprep.subr.mxu0 0.0
    %120 = vmatpush1.msra.mxu0 0.0
    %121 = vmatprep.subr.mxu0 0.0
    %122 = vmatpush1.msra.mxu0 0.0
    %123 = vmatprep.subr.mxu0 0.0
    %124 = vmatpush1.msra.mxu0 0.0
    %125 = vmatprep.subr.mxu0 0.0
    %126 = vmatpush1.msra.mxu0 0.0
    %127 = vmatprep.subr.mxu0 0.0
    %128 = vmatpush1.msra.mxu0 0.0
    %129 = vmatprep.subr.mxu0 0.0
    %130 = vmatpush1.msra.mxu0 0.0
    %131 = vmatprep.subr.mxu0 0.0
    %132 = vmatpush1.msra.mxu0 0.0
    %133 = vmatprep.subr.mxu0 0.0
    %134 = vmatpush1.msra.mxu0 0.0
    %135 = vmatprep.subr.mxu0 0.0
    %136 = vmatpush1.msra.mxu0 0.0
    %137 = vmatprep.subr.mxu0 0.0
    %138 = vmatpush1.msra.mxu0 0.0
    %139 = vmatprep.subr.mxu0 0.0
    %140 = vmatpush1.msra.mxu0 0.0
    %141 = vmatprep.subr.mxu0 0.0
    %142 = vmatpush1.msra.mxu0 0.0
    %143 = vmatprep.subr.mxu0 0.0
    %144 = vmatpush1.msra.mxu0 %v105
    %145 = vmatprep.subr.mxu0 0.0
    %146 = vmatpush2.msra.mxu0 0.0
    %147 = vmatprep.subr.mxu0 0.0
    %148 = vmatpush2.msra.mxu0 0.0
    %149 = vmatprep.subr.mxu0 0.0
    %150 = vmatpush2.msra.mxu0 0.0
    %151 = vmatprep.subr.mxu0 0.0
    %152 = vmatpush2.msra.mxu0 0.0
    %153 = vmatprep.subr.mxu0 0.0
    %154 = vmatpush2.msra.mxu0 0.0
    %155 = vmatprep.subr.mxu0 0.0
    %156 = vmatpush2.msra.mxu0 0.0
    %157 = vmatprep.subr.mxu0 0.0
    %158 = vmatpush2.msra.mxu0 0.0
    %159 = vmatprep.subr.mxu0 0.0
    %160 = vmatpush2.msra.mxu0 0.0
    %161 = vmatprep.subr.mxu0 0.0
    %162 = vmatpush2.msra.mxu0 0.0
    %163 = vmatprep.subr.mxu0 0.0
    %164 = vmatpush2.msra.mxu0 0.0
    %165 = vmatprep.subr.mxu0 0.0
    %166 = vmatpush2.msra.mxu0 0.0
    %167 = vmatprep.subr.mxu0 0.0
    %168 = vmatpush2.msra.mxu0 0.0
    %169 = vmatprep.subr.mxu0 0.0
    %170 = vmatpush2.msra.mxu0 0.0
    %171 = vmatprep.subr.mxu0 0.0
    %172 = vmatpush2.msra.mxu0 0.0
    %173 = vmatprep.subr.mxu0 0.0
    %174 = vmatpush2.msra.mxu0 0.0
    %175 = vmatprep.subr.mxu0 0.0
    %176 = vmatpush2.msra.mxu0 0.0
    %177 = vmatprep.mubr.f32.mxu0 0.0
    %178 = vmatmul.mubr.f32.gmra.mxu0 %v108
    %v179 = vpop.f32.mrf.mxu0
    %v180 = vadd.f32 0.0, %v179
    %v181 = vpop.f32.mrf.mxu0
    %182 = vmatprep.mubr.f32.mxu0 0.0
    %183 = vmatmul.mubr.f32.gmra.mxu0 %v111
    %v184 = vpop.f32.mrf.mxu0
    %v185 = vadd.f32 0.0, %v184
    %v186 = vpop.f32.mrf.mxu0
    %187 = vdwg.mxu0
    %188 = vst [vmem:[#allocation2] sm:$0xff] %v180
    %189 = vst [vmem:[#allocation2 + $0x8] sm:$0xff] %v185
    // Predicated region
    $region14: #{tpu_custom_call.1} parent=1 // pred_check
      _
    $region15: #{tpu_custom_call.1} parent=1 // pred_check_branch
      %191 = sbr.rel (0) target = $region17
    $region16: #{tpu_custom_call.1} parent=1 // pred_region
      %s193 = ssub.s32 256, 256
      %194 = vsyncadd [#allocation3], %s193
      %s195 = sshll.u32 [#allocation2], 4
      %s196 = int_to_ptr.vmem [resolvable:$true] %s195
      %201 = dma.vmem_to_hbm [thread:$0]  %s196, 256, %s3, [#allocation3], 128, 128, 8
    $region17: #{tpu_custom_call.1} parent=1 // pred_fallthru
      _
    // Predicated region
    $region18: #{tpu_custom_call.1} parent=1 // pred_check
      _
    $region19: #{tpu_custom_call.1} parent=1 // pred_check_branch
      %203 = sbr.rel (0) target = $region21
    $region20: #{tpu_custom_call.1} parent=1 // pred_region
      %204 = dma.done [#allocation3], 256
    $region21: #{tpu_custom_call.1} parent=1 // pred_fallthru
      _
    %205 = vsyncpa [#allocation3], 1

// kernel: tpu_custom_call.1
$region0: #{tpu_custom_call.1}
  #allocation0 [shape = 'u32[]', space=smem, size = 0x4, offset = 0x4, fixed_abs, tag = 'smem constant byte address 0x4 - core index']
  #allocation1 [shape = 'u32[144,128]{1,0:T(1,128)}', space=vmem, size = 0x12000, scoped, tag = 'internal scratch']
  %s0 = inlined_call_operand.vmem [shape: f32[16,32], index: 0, kind: input, shape index: {}]
  %s1 = inlined_call_operand.vmem [shape: f32[32,8], index: 1, kind: input, shape index: {}]
  %s2 = inlined_call_operand.vmem [shape: f32[8,128], index: 2, kind: input, shape index: {}]
  %s3 = inlined_call_operand.hbm [shape: f32[16,128], index: 3, kind: output, shape index: {}]
  %s4 = sld [smem:[#allocation0]]
  $region22: #{tpu_custom_call.1} parent=0
    _
  %s6 = ssub.s32 1, %s4
  %s7 = scalar_select 0, %s6, %s4
  $region1: #{tpu_custom_call.1} parent=0
    #allocation2 [shape = 'u8[8192]{0}', space=vmem, size = 0x2000, scoped, tag = 'output window, operand 0, single buffered']
    #allocation3 [shape = 's32[1]{0}', space=sflag, size = 0x4, scoped, tag = 'scoped memory for tpu_custom_call.1']
    %8 = vsyncpa [#allocation3], 0
    // Predicated region
    $region2: #{tpu_custom_call.1} parent=1 // pred_check
      _
    $region3: #{tpu_custom_call.1} parent=1 // pred_check_branch
      %10 = sbr.rel (0) target = $region5
    $region4: #{tpu_custom_call.1} parent=1 // pred_region
      _
    $region5: #{tpu_custom_call.1} parent=1 // pred_fallthru
      _
    // Predicated region
    $region6: #{tpu_custom_call.1} parent=1 // pred_check
      _
    $region7: #{tpu_custom_call.1} parent=1 // pred_check_branch
      %12 = sbr.rel (0) target = $region9
    $region8: #{tpu_custom_call.1} parent=1 // pred_region
      _
    $region9: #{tpu_custom_call.1} parent=1 // pred_fallthru
      _
    // Predicated region
    $region10: #{tpu_custom_call.1} parent=1 // pred_check
      _
    $region11: #{tpu_custom_call.1} parent=1 // pred_check_branch
      %14 = sbr.rel (0) target = $region13
    $region12: #{tpu_custom_call.1} parent=1 // pred_region
      _
    $region13: #{tpu_custom_call.1} parent=1 // pred_fallthru
      _
    %v15 = vld [vmem:[%s0] sm:$0xff]
    %v16 = vld [vmem:[%s0 + $0x8] sm:$0xff]
    %v17 = vld [vmem:[%s1] sm:$0xff]
    %v18 = vld [vmem:[%s1 + $0x8] sm:$0xff]
    %v19 = vld [vmem:[%s1 + $0x10] sm:$0xff]
    %v20 = vld [vmem:[%s1 + $0x18] sm:$0xff]
    %vm21 = vcmask 261120
    %v23 = vsel %vm21, %v15, 0
    %v26 = vsel %vm21, %v16, 0
    %28 = vmatprep.subr.mxu0 0.0
    %29 = vmatpush1.msra.mxu0 0.0
    %30 = vmatprep.subr.mxu0 0.0
    %31 = vmatpush1.msra.mxu0 0.0
    %32 = vmatprep.subr.mxu0 0.0
    %33 = vmatpush1.msra.mxu0 0.0
    %34 = vmatprep.subr.mxu0 0.0
    %35 = vmatpush1.msra.mxu0 0.0
    %36 = vmatprep.subr.mxu0 0.0
    %37 = vmatpush1.msra.mxu0 0.0
    %38 = vmatprep.subr.mxu0 0.0
    %39 = vmatpush1.msra.mxu0 0.0
    %40 = vmatprep.subr.mxu0 0.0
    %41 = vmatpush1.msra.mxu0 0.0
    %42 = vmatprep.subr.mxu0 0.0
    %43 = vmatpush1.msra.mxu0 0.0
    %44 = vmatprep.subr.mxu0 0.0
    %45 = vmatpush1.msra.mxu0 0.0
    %46 = vmatprep.subr.mxu0 0.0
    %47 = vmatpush1.msra.mxu0 0.0
    %48 = vmatprep.subr.mxu0 0.0
    %49 = vmatpush1.msra.mxu0 0.0
    %50 = vmatprep.subr.mxu0 0.0
    %51 = vmatpush1.msra.mxu0 0.0
    %52 = vmatprep.subr.mxu0 0.0
    %53 = vmatpush1.msra.mxu0 %v20
    %54 = vmatprep.subr.mxu0 0.0
    %55 = vmatpush1.msra.mxu0 %v19
    %56 = vmatprep.subr.mxu0 0.0
    %57 = vmatpush1.msra.mxu0 %v18
    %58 = vmatprep.subr.mxu0 0.0
    %59 = vmatpush1.msra.mxu0 %v17
    %60 = vmatprep.subr.mxu0 0.0
    %61 = vmatpush2.msra.mxu0 0.0
    %62 = vmatprep.subr.mxu0 0.0
    %63 = vmatpush2.msra.mxu0 0.0
    %64 = vmatprep.subr.mxu0 0.0
    %65 = vmatpush2.msra.mxu0 0.0
    %66 = vmatprep.subr.mxu0 0.0
    %67 = vmatpush2.msra.mxu0 0.0
    %68 = vmatprep.subr.mxu0 0.0
    %69 = vmatpush2.msra.mxu0 0.0
    %70 = vmatprep.subr.mxu0 0.0
    %71 = vmatpush2.msra.mxu0 0.0
    %72 = vmatprep.subr.mxu0 0.0
    %73 = vmatpush2.msra.mxu0 0.0
    %74 = vmatprep.subr.mxu0 0.0
    %75 = vmatpush2.msra.mxu0 0.0
    %76 = vmatprep.subr.mxu0 0.0
    %77 = vmatpush2.msra.mxu0 0.0
    %78 = vmatprep.subr.mxu0 0.0
    %79 = vmatpush2.msra.mxu0 0.0
    %80 = vmatprep.subr.mxu0 0.0
    %81 = vmatpush2.msra.mxu0 0.0
    %82 = vmatprep.subr.mxu0 0.0
    %83 = vmatpush2.msra.mxu0 0.0
    %84 = vmatprep.subr.mxu0 0.0
    %85 = vmatpush2.msra.mxu0 0.0
    %86 = vmatprep.subr.mxu0 0.0
    %87 = vmatpush2.msra.mxu0 0.0
    %88 = vmatprep.subr.mxu0 0.0
    %89 = vmatpush2.msra.mxu0 0.0
    %90 = vmatprep.subr.mxu0 0.0
    %91 = vmatpush2.msra.mxu0 0.0
    %92 = vmatprep.mubr.f32.mxu0 0.0
    %93 = vmatmul.mubr.f32.gmra.mxu0 %v23
    %v94 = vpop.f32.mrf.mxu0
    %v95 = vadd.f32 0.0, %v94
    %v96 = vpop.f32.mrf.mxu0
    %97 = vmatprep.mubr.f32.mxu0 0.0
    %98 = vmatmul.mubr.f32.gmra.mxu0 %v26
    %v99 = vpop.f32.mrf.mxu0
    %v100 = vadd.f32 0.0, %v99
    %v101 = vpop.f32.mrf.mxu0
    %102 = vdwg.mxu0
    %v103 = vmul.f32 %v95, 2.0
    %v104 = vmul.f32 %v100, 2.0
    %v105 = vld [vmem:[%s2] sm:$0xff]
    %vm106 = vcmask 64512
    %v108 = vsel %vm106, %v103, 0
    %v111 = vsel %vm106, %v104, 0
    %113 = vmatprep.subr.mxu0 0.0
    %114 = vmatpush1.msra.mxu0 0.0
    %115 = vmatprep.subr.mxu0 0.0
    %116 = vmatpush1.msra.mxu0 0.0
    %117 = vmatprep.subr.mxu0 0.0
    %118 = vmatpush1.msra.mxu0 0.0
    %119 = vmatprep.subr.mxu0 0.0
    %120 = vmatpush1.msra.mxu0 0.0
    %121 = vmatprep.subr.mxu0 0.0
    %122 = vmatpush1.msra.mxu0 0.0
    %123 = vmatprep.subr.mxu0 0.0
    %124 = vmatpush1.msra.mxu0 0.0
    %125 = vmatprep.subr.mxu0 0.0
    %126 = vmatpush1.msra.mxu0 0.0
    %127 = vmatprep.subr.mxu0 0.0
    %128 = vmatpush1.msra.mxu0 0.0
    %129 = vmatprep.subr.mxu0 0.0
    %130 = vmatpush1.msra.mxu0 0.0
    %131 = vmatprep.subr.mxu0 0.0
    %132 = vmatpush1.msra.mxu0 0.0
    %133 = vmatprep.subr.mxu0 0.0
    %134 = vmatpush1.msra.mxu0 0.0
    %135 = vmatprep.subr.mxu0 0.0
    %136 = vmatpush1.msra.mxu0 0.0
    %137 = vmatprep.subr.mxu0 0.0
    %138 = vmatpush1.msra.mxu0 0.0
    %139 = vmatprep.subr.mxu0 0.0
    %140 = vmatpush1.msra.mxu0 0.0
    %141 = vmatprep.subr.mxu0 0.0
    %142 = vmatpush1.msra.mxu0 0.0
    %143 = vmatprep.subr.mxu0 0.0
    %144 = vmatpush1.msra.mxu0 %v105
    %145 = vmatprep.subr.mxu0 0.0
    %146 = vmatpush2.msra.mxu0 0.0
    %147 = vmatprep.subr.mxu0 0.0
    %148 = vmatpush2.msra.mxu0 0.0
    %149 = vmatprep.subr.mxu0 0.0
    %150 = vmatpush2.msra.mxu0 0.0
    %151 = vmatprep.subr.mxu0 0.0
    %152 = vmatpush2.msra.mxu0 0.0
    %153 = vmatprep.subr.mxu0 0.0
    %154 = vmatpush2.msra.mxu0 0.0
    %155 = vmatprep.subr.mxu0 0.0
    %156 = vmatpush2.msra.mxu0 0.0
    %157 = vmatprep.subr.mxu0 0.0
    %158 = vmatpush2.msra.mxu0 0.0
    %159 = vmatprep.subr.mxu0 0.0
    %160 = vmatpush2.msra.mxu0 0.0
    %161 = vmatprep.subr.mxu0 0.0
    %162 = vmatpush2.msra.mxu0 0.0
    %163 = vmatprep.subr.mxu0 0.0
    %164 = vmatpush2.msra.mxu0 0.0
    %165 = vmatprep.subr.mxu0 0.0
    %166 = vmatpush2.msra.mxu0 0.0
    %167 = vmatprep.subr.mxu0 0.0
    %168 = vmatpush2.msra.mxu0 0.0
    %169 = vmatprep.subr.mxu0 0.0
    %170 = vmatpush2.msra.mxu0 0.0
    %171 = vmatprep.subr.mxu0 0.0
    %172 = vmatpush2.msra.mxu0 0.0
    %173 = vmatprep.subr.mxu0 0.0
    %174 = vmatpush2.msra.mxu0 0.0
    %175 = vmatprep.subr.mxu0 0.0
    %176 = vmatpush2.msra.mxu0 0.0
    %177 = vmatprep.mubr.f32.mxu0 0.0
    %178 = vmatmul.mubr.f32.gmra.mxu0 %v108
    %v179 = vpop.f32.mrf.mxu0
    %v180 = vadd.f32 0.0, %v179
    %v181 = vpop.f32.mrf.mxu0
    %182 = vmatprep.mubr.f32.mxu0 0.0
    %183 = vmatmul.mubr.f32.gmra.mxu0 %v111
    %v184 = vpop.f32.mrf.mxu0
    %v185 = vadd.f32 0.0, %v184
    %v186 = vpop.f32.mrf.mxu0
    %187 = vdwg.mxu0
    %188 = vst [vmem:[#allocation2] sm:$0xff] %v180
    %189 = vst [vmem:[#allocation2 + $0x8] sm:$0xff] %v185
    // Predicated region
    $region14: #{tpu_custom_call.1} parent=1 // pred_check
      _
    $region15: #{tpu_custom_call.1} parent=1 // pred_check_branch
      %191 = sbr.rel (0) target = $region17
    $region16: #{tpu_custom_call.1} parent=1 // pred_region
      %s193 = ssub.s32 256, 256
      %194 = vsyncadd [#allocation3], %s193
      %s195 = sshll.u32 [#allocation2], 4
      %s196 = int_to_ptr.vmem [resolvable:$true] %s195
      %201 = dma.vmem_to_hbm [thread:$0]  %s196, 256, %s3, [#allocation3], 128, 128, 8
    $region17: #{tpu_custom_call.1} parent=1 // pred_fallthru
      _
    // Predicated region
    $region18: #{tpu_custom_call.1} parent=1 // pred_check
      _
    $region19: #{tpu_custom_call.1} parent=1 // pred_check_branch
      %203 = sbr.rel (0) target = $region21
    $region20: #{tpu_custom_call.1} parent=1 // pred_region
      %204 = dma.done [#allocation3], 256
    $region21: #{tpu_custom_call.1} parent=1 // pred_fallthru
      _
    %205 = vsyncpa [#allocation3], 1

</llo_original>
